<compile_context>
chip_gen: v7x
topology: tpu7x:2x2x1
jax: 0.10.0
libtpu: 0.0.40
codegen_flags: <defaults>
</compile_context>

<pallas_src>
import math
import jax
import jax.numpy as jnp
from jax.experimental import pallas as pl
from jax.experimental.pallas import tpu as pltpu

# ---- small demo config consistent with NanoConfig structure ----
HIDDEN = 32
INTERMEDIATE = 128          # 4 * hidden, same ratio as NanoConfig (1536 = 4*384)
B, S = 2, 8
INIT_RANGE = 0.02

_INV_SQRT2 = 0.7071067811865476


def _erf_f32(x):
    # Abramowitz & Stegun 7.1.26 rational approximation, |err| <= 1.5e-7.
    # Uses only ops with guaranteed Mosaic lowering (abs/exp/div/select); the
    # exp() goes to the EUP slot, which is idle in this kernel.
    p = 0.3275911
    a1, a2, a3, a4, a5 = (0.254829592, -0.284496736, 1.421413741,
                          -1.453152027, 1.061405429)
    ax = jnp.abs(x)
    t = 1.0 / (1.0 + p * ax)
    poly = t * (a1 + t * (a2 + t * (a3 + t * (a4 + t * a5))))
    e = 1.0 - poly * jnp.exp(-(ax * ax))
    return jnp.where(x < 0.0, -e, e)


def _gelu_exact_f32(x):
    # torch.nn.GELU() default (exact erf) semantics.
    return 0.5 * x * (1.0 + _erf_f32(x * _INV_SQRT2))


# ----------------------------- Pallas kernel -----------------------------
def _intermediate_kernel(x_ref, w_ref, b_ref, o_ref):
    # Fused: dense (matmul in the weight's dtype, f32 accumulate) + bias + exact GELU.
    w = w_ref[...]                                   # [H, I], resident across M tiles
    x = x_ref[...].astype(w.dtype)                   # [TM, H]
    y = jnp.dot(x, w, preferred_element_type=jnp.float32)   # [TM, I] f32 accum
    y = y + b_ref[...].astype(jnp.float32)           # bias-add in f32
    o_ref[...] = _gelu_exact_f32(y).astype(o_ref.dtype)


# ----------------------------- wrapper -----------------------------
def _pick_tm(M, H, I, x_bytes=4, out_bytes=4, w_bytes=4,
             vmem_budget=12 * 1024 * 1024):
    """Row-tile size: biggest multiple of 8 whose double-buffered x/out tiles plus
    the resident weight/bias fit a conservative VMEM budget (safe on v7x's smaller
    VMEM and under every generation's scoped default), capped at 1024 rows."""
    resident = H * I * w_bytes + I * w_bytes
    per_row = 2 * (H * x_bytes + I * out_bytes)      # double-buffered in + out tiles
    tm = max(8, (vmem_budget - resident) // per_row)
    tm = min(tm, 1024)                               # diminishing returns past ~512-1024
    tm = min(tm, ((M + 7) // 8) * 8)                 # don't exceed (sublane-padded) M
    return int(max(8, (tm // 8) * 8))


def nano_intermediate_forward(hidden_states, w, b):
    """hidden_states: [B, S, H] f32; w: [H, I] (f32 or bf16); b: [1, I] -> [B, S, I] f32."""
    B_, S_, H_ = hidden_states.shape
    I_ = w.shape[1]
    M = B_ * S_
    x2d = hidden_states.reshape(M, H_)               # flat row slab; batch as many rows
                                                     # per launch as the call-site allows
    tm = _pick_tm(M, H_, I_)
    grid = (pl.cdiv(M, tm),)

    out2d = pl.pallas_call(
        _intermediate_kernel,
        out_shape=jax.ShapeDtypeStruct((M, I_), jnp.float32),
        grid=grid,
        in_specs=[
            pl.BlockSpec((tm, H_), lambda i: (i, 0)),      # activations: tiled over rows
            pl.BlockSpec((H_, I_), lambda i: (0, 0)),      # weight: VMEM-resident
            pl.BlockSpec((1, I_), lambda i: (0, 0)),       # bias:   VMEM-resident
        ],
        out_specs=pl.BlockSpec((tm, I_), lambda i: (i, 0)),
        compiler_params=pltpu.CompilerParams(
            dimension_semantics=("parallel",)),            # shard M over v7x's 2 TCs
    )(x2d, w, b)
    return out2d.reshape(B_, S_, I_)


def reference_forward(hidden_states, w, b):
    """Pure-JAX reference matching torch.nn.Linear + torch.nn.GELU() (exact erf)."""
    y = jnp.einsum('bsh,hi->bsi', hidden_states.astype(jnp.float32),
                   w.astype(jnp.float32),
                   preferred_element_type=jnp.float32) + b.astype(jnp.float32)
    return 0.5 * y * (1.0 + jax.scipy.special.erf(y * _INV_SQRT2))


# ----------------------------- main -----------------------------
if __name__ == "__main__":
    key = jax.random.PRNGKey(0)
    kx, kw, kb = jax.random.split(key, 3)

    hidden_states = jax.random.normal(kx, (B, S, HIDDEN), jnp.float32)
    # Demo keeps f32 params for exact torch parity (f32 matmul is free at this size).
    # At real NanoConfig sizes create these once in bf16 to halve weight DMA bytes:
    #   w = (... ).astype(jnp.bfloat16); b = (...).astype(jnp.bfloat16)
    w = jax.random.normal(kw, (HIDDEN, INTERMEDIATE), jnp.float32) * INIT_RANGE
    b = jax.random.normal(kb, (1, INTERMEDIATE), jnp.float32) * INIT_RANGE

    out = jax.block_until_ready(nano_intermediate_forward(hidden_states, w, b))
    ref = reference_forward(hidden_states, w, b)

    assert out.shape == (B, S, INTERMEDIATE) and out.dtype == jnp.float32
    assert bool(jnp.all(jnp.isfinite(out)))
    # f32 matmul + exact-erf GELU -> tight tolerance vs the erf reference.
    assert bool(jnp.allclose(out, ref, atol=1e-3, rtol=1e-3))

    print("KERNEL_OK")
</pallas_src>

<mosaic_0001>
module attributes {stable_mosaic.version = 11 : i64} {
  func.func @_intermediate_kernel(%arg0: i32, %arg1: memref<16x32xf32, #tpu.memory_space<vmem>>, %arg2: memref<32x128xf32, #tpu.memory_space<vmem>>, %arg3: memref<1x128xf32, #tpu.memory_space<vmem>>, %arg4: memref<16x128xf32, #tpu.memory_space<vmem>>) attributes {dimension_semantics = [#tpu.dimension_semantics<parallel>], iteration_bounds = array<i64: 1>, scalar_prefetch = 0 : i64, scratch_operands = 0 : i64, tpu.core_type = #tpu.core_type<tc>, window_params = [{transform_indices = @transform_0, window_bounds = array<i64: 16, 32>}, {pipeline_mode = #tpu.pipeline_mode<synchronous>, transform_indices = @transform_1, window_bounds = array<i64: 32, 128>}, {pipeline_mode = #tpu.pipeline_mode<synchronous>, transform_indices = @transform_2, window_bounds = array<i64: 1, 128>}, {transform_indices = @transform_3, window_bounds = array<i64: 16, 128>}]} {
    %c0 = arith.constant 0 : index
    %c0_0 = arith.constant 0 : index
    %0 = vector.load %arg2[%c0, %c0_0] : memref<32x128xf32, #tpu.memory_space<vmem>>, vector<32x128xf32>
    %c0_1 = arith.constant 0 : index
    %c0_2 = arith.constant 0 : index
    %1 = vector.load %arg1[%c0_1, %c0_2] : memref<16x32xf32, #tpu.memory_space<vmem>>, vector<16x32xf32>
    %cst = arith.constant dense<0.000000e+00> : vector<16x128xf32>
    %2 = tpu.matmul %1, %0, %cst {dimension_numbers = #tpu.dot_dimension_numbers<[1], [0], [0], [1], [0, 0, 1, 1], [], []>} : vector<16x32xf32>, vector<32x128xf32>, vector<16x128xf32> -> vector<16x128xf32>
    %c0_3 = arith.constant 0 : index
    %c0_4 = arith.constant 0 : index
    %3 = vector.load %arg3[%c0_3, %c0_4] : memref<1x128xf32, #tpu.memory_space<vmem>>, vector<1x128xf32>
    %4 = vector.broadcast %3 : vector<1x128xf32> to vector<16x128xf32>
    %5 = arith.addf %2, %4 : vector<16x128xf32>
    %cst_5 = arith.constant 5.000000e-01 : f32
    %6 = vector.broadcast %cst_5 : f32 to vector<16x128xf32>
    %7 = arith.mulf %6, %5 : vector<16x128xf32>
    %cst_6 = arith.constant 0.707106769 : f32
    %8 = vector.broadcast %cst_6 : f32 to vector<16x128xf32>
    %9 = arith.mulf %5, %8 : vector<16x128xf32>
    %10 = math.absf %9 : vector<16x128xf32>
    %cst_7 = arith.constant 0.327591091 : f32
    %11 = vector.broadcast %cst_7 : f32 to vector<16x128xf32>
    %12 = arith.mulf %11, %10 : vector<16x128xf32>
    %cst_8 = arith.constant 1.000000e+00 : f32
    %13 = vector.broadcast %cst_8 : f32 to vector<16x128xf32>
    %14 = arith.addf %13, %12 : vector<16x128xf32>
    %cst_9 = arith.constant 1.000000e+00 : f32
    %15 = vector.broadcast %cst_9 : f32 to vector<16x128xf32>
    %16 = arith.divf %15, %14 : vector<16x128xf32>
    %cst_10 = arith.constant 1.06140542 : f32
    %17 = vector.broadcast %cst_10 : f32 to vector<16x128xf32>
    %18 = arith.mulf %16, %17 : vector<16x128xf32>
    %cst_11 = arith.constant -1.45315206 : f32
    %19 = vector.broadcast %cst_11 : f32 to vector<16x128xf32>
    %20 = arith.addf %19, %18 : vector<16x128xf32>
    %21 = arith.mulf %16, %20 : vector<16x128xf32>
    %cst_12 = arith.constant 1.42141378 : f32
    %22 = vector.broadcast %cst_12 : f32 to vector<16x128xf32>
    %23 = arith.addf %22, %21 : vector<16x128xf32>
    %24 = arith.mulf %16, %23 : vector<16x128xf32>
    %cst_13 = arith.constant -0.284496725 : f32
    %25 = vector.broadcast %cst_13 : f32 to vector<16x128xf32>
    %26 = arith.addf %25, %24 : vector<16x128xf32>
    %27 = arith.mulf %16, %26 : vector<16x128xf32>
    %cst_14 = arith.constant 0.254829586 : f32
    %28 = vector.broadcast %cst_14 : f32 to vector<16x128xf32>
    %29 = arith.addf %28, %27 : vector<16x128xf32>
    %30 = arith.mulf %16, %29 : vector<16x128xf32>
    %31 = arith.mulf %10, %10 : vector<16x128xf32>
    %cst_15 = arith.constant 0.000000e+00 : f32
    %32 = vector.broadcast %cst_15 : f32 to vector<16x128xf32>
    %33 = arith.subf %32, %31 : vector<16x128xf32>
    %34 = math.exp %33 : vector<16x128xf32>
    %35 = arith.mulf %30, %34 : vector<16x128xf32>
    %cst_16 = arith.constant 1.000000e+00 : f32
    %36 = vector.broadcast %cst_16 : f32 to vector<16x128xf32>
    %37 = arith.subf %36, %35 : vector<16x128xf32>
    %cst_17 = arith.constant 0.000000e+00 : f32
    %38 = vector.broadcast %cst_17 : f32 to vector<16x128xf32>
    %39 = arith.cmpf olt, %9, %38 : vector<16x128xf32>
    %cst_18 = arith.constant 0.000000e+00 : f32
    %40 = vector.broadcast %cst_18 : f32 to vector<16x128xf32>
    %41 = arith.subf %40, %37 : vector<16x128xf32>
    %42 = arith.select %39, %41, %37 : vector<16x128xi1>, vector<16x128xf32>
    %cst_19 = arith.constant 1.000000e+00 : f32
    %43 = vector.broadcast %cst_19 : f32 to vector<16x128xf32>
    %44 = arith.addf %43, %42 : vector<16x128xf32>
    %45 = arith.mulf %7, %44 : vector<16x128xf32>
    %c0_20 = arith.constant 0 : index
    %c0_21 = arith.constant 0 : index
    %46 = vector.load %arg4[%c0_20, %c0_21] : memref<16x128xf32, #tpu.memory_space<vmem>>, vector<16x128xf32>
    tpu.vector_store %arg4[%c0_20, %c0_21], %45 {strides = array<i32>} : memref<16x128xf32, #tpu.memory_space<vmem>>, vector<16x128xf32>,
    return
  }
  func.func @transform_0(%arg0: i32) -> (i32, i32) {
    %c0_i32 = arith.constant 0 : i32
    %c0_i32_0 = arith.constant 0 : i32
    return %arg0, %c0_i32 : i32, i32
  }
  func.func @transform_1(%arg0: i32) -> (i32, i32) {
    %c0_i32 = arith.constant 0 : i32
    %c0_i32_0 = arith.constant 0 : i32
    %c0_i32_1 = arith.constant 0 : i32
    return %c0_i32, %c0_i32_0 : i32, i32
  }
  func.func @transform_2(%arg0: i32) -> (i32, i32) {
    %c0_i32 = arith.constant 0 : i32
    %c0_i32_0 = arith.constant 0 : i32
    %c0_i32_1 = arith.constant 0 : i32
    return %c0_i32, %c0_i32_0 : i32, i32
  }
  func.func @transform_3(%arg0: i32) -> (i32, i32) {
    %c0_i32 = arith.constant 0 : i32
    %c0_i32_0 = arith.constant 0 : i32
    return %arg0, %c0_i32 : i32, i32
  }
}

</mosaic_0001>

<llo_original>
// kernel: tpu_custom_call.1
$region0: #{tpu_custom_call.1}
  #allocation0 [shape = 'u32[]', space=smem, size = 0x4, offset = 0x4, fixed_abs, tag = 'smem constant byte address 0x4 - core index']
  #allocation1 [shape = 'u32[144,128]{1,0:T(1,128)}', space=vmem, size = 0x12000, scoped, tag = 'internal scratch']
  %s0 = inlined_call_operand.hbm [shape: f32[16,32], index: 0, kind: input, shape index: {}]
  %s1 = inlined_call_operand.hbm [shape: f32[32,128], index: 1, kind: input, shape index: {}]
  %s2 = inlined_call_operand.vmem [shape: f32[1,128], index: 2, kind: input, shape index: {}]
  %s3 = inlined_call_operand.hbm [shape: f32[16,128], index: 3, kind: output, shape index: {}]
  %s4 = sld [smem:[#allocation0]]
  $region30: #{tpu_custom_call.1} parent=0
    _
  %s6 = ssub.s32 1, %s4
  %s7 = scalar_select 0, %s6, %s4
  $region1: #{tpu_custom_call.1} parent=0
    #allocation2 [shape = 'u8[8192]{0}', space=vmem, size = 0x2000, scoped, tag = 'input window, operand 0, single buffered']
    #allocation3 [shape = 's32[1]{0}', space=sflag, size = 0x4, scoped, tag = 'scoped memory for tpu_custom_call.1']
    #allocation4 [shape = 's32[1]{0}', space=sflag, size = 0x4, scoped, tag = 'scoped memory for tpu_custom_call.1']
    #allocation5 [shape = 'u8[16384]{0}', space=vmem, size = 0x4000, scoped, tag = 'input window, operand 1, single buffered']
    #allocation6 [shape = 's32[1]{0}', space=sflag, size = 0x4, scoped, tag = 'scoped memory for tpu_custom_call.1']
    #allocation7 [shape = 'u8[8192]{0}', space=vmem, size = 0x2000, scoped, tag = 'output window, operand 0, single buffered']
    %8 = vsyncpa [#allocation3], 0
    %9 = vsyncpa [#allocation6], 0
    %10 = vsyncpa [#allocation4], 0
    // Predicated region
    $region2: #{tpu_custom_call.1} parent=1 // pred_check
      _
    $region3: #{tpu_custom_call.1} parent=1 // pred_check_branch
      %12 = sbr.rel (0) target = $region5
    $region4: #{tpu_custom_call.1} parent=1 // pred_region
      %s14 = ssub.s32 256, 256
      %15 = vsyncadd [#allocation3], %s14
      %s16 = sshll.u32 [#allocation2], 4
      %s17 = int_to_ptr.vmem [resolvable:$true] %s16
      %22 = dma.hbm_to_vmem [thread:$0]  %s0, 256, %s17, [#allocation3], 128, 128, 8
    $region5: #{tpu_custom_call.1} parent=1 // pred_fallthru
      _
    // Predicated region
    $region6: #{tpu_custom_call.1} parent=1 // pred_check
      _
    $region7: #{tpu_custom_call.1} parent=1 // pred_check_branch
      %24 = sbr.rel (0) target = $region9
    $region8: #{tpu_custom_call.1} parent=1 // pred_region
      %s26 = ssub.s32 512, 512
      %27 = vsyncadd [#allocation6], %s26
      %s28 = sshll.u32 [#allocation5], 4
      %s29 = int_to_ptr.vmem [resolvable:$true] %s28
      %34 = dma.hbm_to_vmem [thread:$0]  %s1, 512, %s29, [#allocation6], 128, 128, 8
    $region9: #{tpu_custom_call.1} parent=1 // pred_fallthru
      _
    // Predicated region
    $region10: #{tpu_custom_call.1} parent=1 // pred_check
      _
    $region11: #{tpu_custom_call.1} parent=1 // pred_check_branch
      %36 = sbr.rel (0) target = $region13
    $region12: #{tpu_custom_call.1} parent=1 // pred_region
      _
    $region13: #{tpu_custom_call.1} parent=1 // pred_fallthru
      _
    // Predicated region
    $region14: #{tpu_custom_call.1} parent=1 // pred_check
      _
    $region15: #{tpu_custom_call.1} parent=1 // pred_check_branch
      %38 = sbr.rel (0) target = $region17
    $region16: #{tpu_custom_call.1} parent=1 // pred_region
      %39 = dma.done [#allocation3], 256
    $region17: #{tpu_custom_call.1} parent=1 // pred_fallthru
      _
    // Predicated region
    $region18: #{tpu_custom_call.1} parent=1 // pred_check
      _
    $region19: #{tpu_custom_call.1} parent=1 // pred_check_branch
      %41 = sbr.rel (0) target = $region21
    $region20: #{tpu_custom_call.1} parent=1 // pred_region
      %42 = dma.done [#allocation6], 512
    $region21: #{tpu_custom_call.1} parent=1 // pred_fallthru
      _
    %v43 = vld [vmem:[#allocation5] sm:$0xff]
    %v44 = vld [vmem:[#allocation5 + $0x8] sm:$0xff]
    %v45 = vld [vmem:[#allocation5 + $0x10] sm:$0xff]
    %v46 = vld [vmem:[#allocation5 + $0x18] sm:$0xff]
    %v47 = vld [vmem:[#allocation2] sm:$0xff]
    %v48 = vld [vmem:[#allocation2 + $0x8] sm:$0xff]
    %v49 = vld [vmem:[%s2] sm:$0x1]
    %v51 = vlaneseq
    %v52 = vshrl.u32 %v51, 7
    %v53 = vsub.s32 0, %v52
    %v54 = vrot.slane %v49, %v53
    %vm56 = vcmask 261120
    %v58 = vsel %vm56, %v47, 0
    %v61 = vsel %vm56, %v48, 0
    %63 = vmatprep.subr.mxu0 0.0
    %64 = vmatpush1.msra.mxu0 %v43
    %65 = vmatprep.subr.mxu0 0.0
    %66 = vmatpush1.msra.mxu0 %v44
    %67 = vmatprep.subr.mxu0 0.0
    %68 = vmatpush1.msra.mxu0 %v45
    %69 = vmatprep.subr.mxu0 0.0
    %70 = vmatpush1.msra.mxu0 %v46
    %71 = vmatprep.subr.mxu0 0.0
    %72 = vmatpush1.msra.mxu0 0.0
    %73 = vmatprep.subr.mxu0 0.0
    %74 = vmatpush1.msra.mxu0 0.0
    %75 = vmatprep.subr.mxu0 0.0
    %76 = vmatpush1.msra.mxu0 0.0
    %77 = vmatprep.subr.mxu0 0.0
    %78 = vmatpush1.msra.mxu0 0.0
    %79 = vmatprep.subr.mxu0 0.0
    %80 = vmatpush1.msra.mxu0 0.0
    %81 = vmatprep.subr.mxu0 0.0
    %82 = vmatpush1.msra.mxu0 0.0
    %83 = vmatprep.subr.mxu0 0.0
    %84 = vmatpush1.msra.mxu0 0.0
    %85 = vmatprep.subr.mxu0 0.0
    %86 = vmatpush1.msra.mxu0 0.0
    %87 = vmatprep.subr.mxu0 0.0
    %88 = vmatpush1.msra.mxu0 0.0
    %89 = vmatprep.subr.mxu0 0.0
    %90 = vmatpush1.msra.mxu0 0.0
    %91 = vmatprep.subr.mxu0 0.0
    %92 = vmatpush1.msra.mxu0 0.0
    %93 = vmatprep.subr.mxu0 0.0
    %94 = vmatpush1.msra.mxu0 0.0
    %95 = vmatprep.subr.mxu0 0.0
    %96 = vmatpush1.msra.mxu0 0.0
    %97 = vmatprep.subr.mxu0 0.0
    %98 = vmatpush1.msra.mxu0 0.0
    %99 = vmatprep.subr.mxu0 0.0
    %100 = vmatpush1.msra.mxu0 0.0
    %101 = vmatprep.subr.mxu0 0.0
    %102 = vmatpush1.msra.mxu0 0.0
    %103 = vmatprep.subr.mxu0 0.0
    %104 = vmatpush1.msra.mxu0 0.0
    %105 = vmatprep.subr.mxu0 0.0
    %106 = vmatpush1.msra.mxu0 0.0
    %107 = vmatprep.subr.mxu0 0.0
    %108 = vmatpush1.msra.mxu0 0.0
    %109 = vmatprep.subr.mxu0 0.0
    %110 = vmatpush1.msra.mxu0 0.0
    %111 = vmatprep.subr.mxu0 0.0
    %112 = vmatpush1.msra.mxu0 0.0
    %113 = vmatprep.subr.mxu0 0.0
    %114 = vmatpush1.msra.mxu0 0.0
    %115 = vmatprep.subr.mxu0 0.0
    %116 = vmatpush1.msra.mxu0 0.0
    %117 = vmatprep.subr.mxu0 0.0
    %118 = vmatpush1.msra.mxu0 0.0
    %119 = vmatprep.subr.mxu0 0.0
    %120 = vmatpush1.msra.mxu0 0.0
    %121 = vmatprep.subr.mxu0 0.0
    %122 = vmatpush1.msra.mxu0 0.0
    %123 = vmatprep.subr.mxu0 0.0
    %124 = vmatpush1.msra.mxu0 0.0
    %125 = vmatprep.subr.mxu0 0.0
    %126 = vmatpush1.msra.mxu0 0.0
    %127 = vmatprep.mubr.f32.mxu0 0.0
    %128 = vmatmul.mubr.f32.gmra.mrb[0].mxu0 %v58
    %v129 = vpop.f32.mrb[0].mxu0
    %v130 = vadd.f32 %v54, %v129
    %v131 = vpop.f32.mrb[0].mxu0
    %132 = vmatprep.mubr.f32.mxu0 0.0
    %133 = vmatmul.mubr.f32.gmra.mrb[0].mxu0 %v61
    %v134 = vpop.f32.mrb[0].mxu0
    %v135 = vadd.f32 %v54, %v134
    %v136 = vpop.f32.mrb[0].mxu0
    %137 = vdwg.mxu0
    %v138 = vmul.f32 %v130, 0.5
    %v139 = vmul.f32 %v135, 0.5
    %v140 = vmul.f32 %v130, 0.70710677
    %v141 = vmul.f32 %v135, 0.70710677
    %v142 = vand.u32 2147483647, %v140
    %v143 = vand.u32 2147483647, %v141
    %v144 = vmul.f32 %v142, 0.3275911
    %v145 = vmul.f32 %v143, 0.3275911
    %v146 = vadd.f32 %v144, 1.0
    %v147 = vadd.f32 %v145, 1.0
    %v148 = vrcp.pop %v146
    %v149 = vmul.f32 1.0, %v148
    %v150 = vrcp.pop %v147
    %v151 = vmul.f32 1.0, %v150
    %v152 = vmul.f32 %v149, 1.0614054
    %v153 = vmul.f32 %v151, 1.0614054
    %v154 = vadd.f32 %v152, -1.4531521
    %v155 = vadd.f32 %v153, -1.4531521
    %v156 = vmul.f32 %v149, %v154
    %v157 = vmul.f32 %v151, %v155
    %v158 = vadd.f32 %v156, 1.4214138
    %v159 = vadd.f32 %v157, 1.4214138
    %v160 = vmul.f32 %v149, %v158
    %v161 = vmul.f32 %v151, %v159
    %v162 = vadd.f32 %v160, -0.28449672
    %v163 = vadd.f32 %v161, -0.28449672
    %v164 = vmul.f32 %v149, %v162
    %v165 = vmul.f32 %v151, %v163
    %v166 = vadd.f32 %v164, 0.2548296
    %v167 = vadd.f32 %v165, 0.2548296
    %v168 = vmul.f32 %v149, %v166
    %v169 = vmul.f32 %v151, %v167
    %v170 = vmul.f32 %v142, %v142
    %v171 = vmul.f32 %v143, %v143
    %v172 = vsub.f32 0.0, %v170
    %v173 = vsub.f32 0.0, %v171
    %v174 = vmul.f32 %v172, 1.442695
    %v175 = vpow.pop %v174
    %v176 = vmul.f32 %v173, 1.442695
    %v177 = vpow.pop %v176
    %v178 = vmul.f32 %v168, %v175
    %v179 = vmul.f32 %v169, %v177
    %v180 = vsub.f32 1.0, %v178
    %v181 = vsub.f32 1.0, %v179
    %vm182 = vcmp.lt.f32.partialorder %v140, 0.0
    %vm183 = vcmp.lt.f32.partialorder %v141, 0.0
    %v184 = vsub.f32 0.0, %v180
    %v185 = vsub.f32 0.0, %v181
    %v186 = vsel %vm182, %v184, %v180
    %v187 = vsel %vm183, %v185, %v181
    %v188 = vadd.f32 %v186, 1.0
    %v189 = vadd.f32 %v187, 1.0
    %v190 = vmul.f32 %v138, %v188
    %v191 = vmul.f32 %v139, %v189
    %192 = vst [vmem:[#allocation7] sm:$0xff] %v190
    %193 = vst [vmem:[#allocation7 + $0x8] sm:$0xff] %v191
    // Predicated region
    $region22: #{tpu_custom_call.1} parent=1 // pred_check
      _
    $region23: #{tpu_custom_call.1} parent=1 // pred_check_branch
      %195 = sbr.rel (0) target = $region25
    $region24: #{tpu_custom_call.1} parent=1 // pred_region
      %s197 = ssub.s32 256, 256
      %198 = vsyncadd [#allocation4], %s197
      %s199 = sshll.u32 [#allocation7], 4
      %s200 = int_to_ptr.vmem [resolvable:$true] %s199
      %205 = dma.vmem_to_hbm [thread:$0]  %s200, 256, %s3, [#allocation4], 128, 128, 8
    $region25: #{tpu_custom_call.1} parent=1 // pred_fallthru
      _
    // Predicated region
    $region26: #{tpu_custom_call.1} parent=1 // pred_check
      _
    $region27: #{tpu_custom_call.1} parent=1 // pred_check_branch
      %207 = sbr.rel (0) target = $region29
    $region28: #{tpu_custom_call.1} parent=1 // pred_region
      %208 = dma.done [#allocation4], 256
    $region29: #{tpu_custom_call.1} parent=1 // pred_fallthru
      _
    %209 = vsyncpa [#allocation3], 1
    %210 = vsyncpa [#allocation6], 1
    %211 = vsyncpa [#allocation4], 1

</llo_original>
